<compile_context>
chip_gen: v6e
topology: v6e:2x2x1
jax: 0.10.0
libtpu: 0.0.40
codegen_flags: <defaults>
</compile_context>

<pallas_src>
import functools

import jax
import jax.numpy as jnp
import numpy as np
from jax.experimental import pallas as pl
from jax.experimental.pallas import tpu as pltpu

K = 4        # kernel_size
STRIDE = 2
PAD = 1


def _deconv_prelu_kernel(x_ref, w_ref, b_ref, a_ref, o_ref, *, row_tile, W, Cin, Cout):
    """One (batch, row-tile) grid step.

    x_ref: (1, 1, row_tile+2, W+2, Cin) bf16  padded input window (VMEM)
    w_ref: (9*Cin, 4*Cout)              bf16  phase-packed polyphase weights
    b_ref: (1, 4*Cout)                  f32   bias tiled over the 4 sub-pixel phases
    a_ref: (1,)                         f32   PReLU slope (SMEM scalar)
    o_ref: (1, 1, row_tile*W, 4*Cout)   f32   packed output slab
    """
    x = x_ref[0, 0]                                           # (row_tile+2, W+2, Cin) bf16

    # Build the 3x3-neighbourhood im2col slab once per step: 9 static slices + one
    # lane-concat + one leading-dim merge.  Row order = i*W + j, col order = (a*3+b)*Cin+ci.
    pieces = [x[a:a + row_tile, b:b + W, :] for a in range(3) for b in range(3)]
    slab = jnp.concatenate(pieces, axis=-1)                   # (row_tile, W, 9*Cin)
    slab = slab.reshape(row_tile * W, 9 * Cin)

    # Single MXU matmul: contraction depth 9*Cin, all 4 output phases produced at once
    # (bf16 operands, f32 accumulation) -- no per-tap accumulator to spill.
    acc = jnp.dot(slab, w_ref[...], preferred_element_type=jnp.float32)  # (rt*W, 4*Cout)

    acc = acc + b_ref[...]                                    # bias (broadcast over rows)
    alpha = a_ref[0]                                          # SMEM scalar
    acc = jnp.where(acc >= 0.0, acc, alpha * acc)             # PReLU (single shared slope)

    o_ref[0, 0] = acc.astype(o_ref.dtype)


def _pick_row_tile(H, requested):
    for t in (requested, 8, 4, 2, 1):
        if t is not None and t >= 1 and H % t == 0:
            return int(t)
    return 1


@functools.partial(jax.jit, static_argnames=("row_tile",))
def deconv_block_forward(x_nchw, w_pt, b_pt, prelu_alpha, row_tile=8):
    """Equivalent of DeconvBlock(input_size, output_size).forward(x) with norm=None.

    x_nchw : (N, Cin, H, W)      float32
    w_pt   : (Cin, Cout, K, K)   ConvTranspose2d weight (PyTorch layout)
    b_pt   : (Cout,)             ConvTranspose2d bias
    prelu_alpha : scalar         PReLU single parameter
    returns: (N, Cout, 2H, 2W)   float32 (NCHW, matching PyTorch)
    """
    N, Cin, H, W = x_nchw.shape
    Cout = w_pt.shape[1]
    Ho, Wo = STRIDE * H, STRIDE * W
    TH = _pick_row_tile(H, row_tile)
    nT = H // TH

    # ---- glue (no FLOPs): NHWC, bf16, +1 zero pad, overlapping (TH+2)-row windows ----
    x = jnp.transpose(x_nchw, (0, 2, 3, 1)).astype(jnp.bfloat16)      # (N, H, W, Cin)
    x = jnp.pad(x, ((0, 0), (1, 1), (1, 1), (0, 0)))                  # (N, H+2, W+2, Cin)
    row_idx = jnp.arange(nT)[:, None] * TH + jnp.arange(TH + 2)[None, :]
    x = x[:, row_idx]                                                 # (N, nT, TH+2, W+2, Cin)

    # ---- phase-packed polyphase weight matrix (9*Cin, 4*Cout), bf16 ----
    #   row = (a*3 + b)*Cin + ci   with (a, b) the 3x3 neighbourhood offset (padded coords)
    #   col = (dh*2 + dw)*Cout + co with (dh, dw) the output sub-pixel phase
    #   For oh = 2i+dh, the contributing input row is ih = i + a - 1 and the tap is
    #   kh = 3 + dh - 2a, valid only for a in {dh, dh+1} (same for columns).
    wmat = jnp.zeros((9 * Cin, 4 * Cout), jnp.float32)
    for dh in (0, 1):
        for dw in (0, 1):
            for a in (dh, dh + 1):
                for b in (dw, dw + 1):
                    kh, kw = 3 + dh - 2 * a, 3 + dw - 2 * b
                    r0, c0 = (a * 3 + b) * Cin, (dh * 2 + dw) * Cout
                    wmat = wmat.at[r0:r0 + Cin, c0:c0 + Cout].set(w_pt[:, :, kh, kw])
    wmat = wmat.astype(jnp.bfloat16)

    b_tiled = jnp.tile(b_pt.astype(jnp.float32), 4).reshape(1, 4 * Cout)
    alpha = jnp.asarray(prelu_alpha, jnp.float32).reshape(1)

    kernel = functools.partial(
        _deconv_prelu_kernel, row_tile=TH, W=W, Cin=Cin, Cout=Cout)

    out = pl.pallas_call(
        kernel,
        out_shape=jax.ShapeDtypeStruct((N, nT, TH * W, 4 * Cout), jnp.float32),
        grid_spec=pltpu.PrefetchScalarGridSpec(
            num_scalar_prefetch=0,
            grid=(N, nT),
            in_specs=[
                pl.BlockSpec((1, 1, TH + 2, W + 2, Cin),
                             lambda n, t: (n, t, 0, 0, 0)),
                pl.BlockSpec((9 * Cin, 4 * Cout), lambda n, t: (0, 0)),
                pl.BlockSpec((1, 4 * Cout), lambda n, t: (0, 0)),
                pl.BlockSpec(memory_space=pltpu.MemorySpace.SMEM),   # PReLU alpha
            ],
            out_specs=pl.BlockSpec((1, 1, TH * W, 4 * Cout),
                                   lambda n, t: (n, t, 0, 0)),
        ),
        compiler_params=pltpu.CompilerParams(
            dimension_semantics=("parallel", "parallel"),
            vmem_limit_bytes=32 * 1024 * 1024,
        ),
    )(x, wmat, b_tiled, alpha)

    # ---- unpack phases: one combined depth-to-space + NHWC->NCHW transpose ----
    out = out.reshape(N, nT, TH, W, 2, 2, Cout)        # (n, t, i, j, dh, dw, co)
    out = jnp.transpose(out, (0, 6, 1, 2, 4, 3, 5))    # (n, co, t, i, dh, j, dw)
    return out.reshape(N, Cout, Ho, Wo)


def _reference(x_nchw, w_pt, b_pt, prelu_alpha):
    """Pure-JAX reference: transposed conv via lhs-dilated conv + PReLU (f32)."""
    x_nhwc = jnp.transpose(x_nchw, (0, 2, 3, 1)).astype(jnp.float32)
    w_hwio = jnp.transpose(w_pt[:, :, ::-1, ::-1], (2, 3, 0, 1)).astype(jnp.float32)
    pad_eff = K - 1 - PAD
    y = jax.lax.conv_general_dilated(
        x_nhwc, w_hwio,
        window_strides=(1, 1),
        padding=((pad_eff, pad_eff), (pad_eff, pad_eff)),
        lhs_dilation=(STRIDE, STRIDE),
        dimension_numbers=("NHWC", "HWIO", "NHWC"),
    ) + b_pt[None, None, None, :]
    y = jnp.where(y >= 0, y, prelu_alpha * y)
    return jnp.transpose(y, (0, 3, 1, 2))


if __name__ == "__main__":
    # Small shapes consistent with the module: batch=2, Cin=4, Cout=8, H=W=16.
    N, Cin, Cout, H, W = 2, 4, 8, 16, 16

    key = jax.random.PRNGKey(0)
    kx, kw, kb = jax.random.split(key, 3)
    x = jax.random.normal(kx, (N, Cin, H, W), dtype=jnp.float32)

    # Deterministic parameter init (ConvTranspose2d weight (Cin, Cout, K, K), bias (Cout,)).
    fan = Cin * K * K
    bound = 1.0 / np.sqrt(fan)
    w_pt = jax.random.uniform(kw, (Cin, Cout, K, K), jnp.float32, -bound, bound)
    b_pt = jax.random.uniform(kb, (Cout,), jnp.float32, -bound, bound)
    prelu_alpha = 0.25  # torch.nn.PReLU() default single parameter

    out = jax.block_until_ready(deconv_block_forward(x, w_pt, b_pt, prelu_alpha))
    assert out.shape == (N, Cout, STRIDE * H, STRIDE * W), out.shape

    ref = jax.block_until_ready(_reference(x, w_pt, b_pt, prelu_alpha))
    # bf16 MXU operands / bf16 input (f32 accumulation) -> loosened tolerance vs f32 ref.
    np.testing.assert_allclose(np.asarray(out), np.asarray(ref), rtol=2e-2, atol=2e-2)

    print("KERNEL_OK")
</pallas_src>

<mosaic_0001>
module attributes {stable_mosaic.version = 11 : i64} {
  func.func @_deconv_prelu_kernel(%arg0: i32, %arg1: i32, %arg2: memref<1x1x10x18x4xbf16, #tpu.memory_space<vmem>>, %arg3: memref<36x32xbf16, #tpu.memory_space<vmem>>, %arg4: memref<1x32xf32, #tpu.memory_space<vmem>>, %arg5: memref<1xf32, #tpu.memory_space<smem>>, %arg6: memref<1x1x128x32xf32, #tpu.memory_space<vmem>>) attributes {dimension_semantics = [#tpu.dimension_semantics<parallel>, #tpu.dimension_semantics<parallel>], iteration_bounds = array<i64: 2, 2>, scalar_prefetch = 0 : i64, scratch_operands = 0 : i64, tpu.core_type = #tpu.core_type<tc>, window_params = [{transform_indices = @transform_0, window_bounds = array<i64: 1, 1, 10, 18, 4>}, {pipeline_mode = #tpu.pipeline_mode<synchronous>, transform_indices = @transform_1, window_bounds = array<i64: 36, 32>}, {pipeline_mode = #tpu.pipeline_mode<synchronous>, transform_indices = @transform_2, window_bounds = array<i64: 1, 32>}, {transform_indices = @transform_3, window_bounds = array<i64: 1>}, {transform_indices = @transform_4, window_bounds = array<i64: 1, 1, 128, 32>}]} {
    %c0 = arith.constant 0 : index
    %c0_0 = arith.constant 0 : index
    %c0_1 = arith.constant 0 : index
    %c0_2 = arith.constant 0 : index
    %c0_3 = arith.constant 0 : index
    %0 = vector.load %arg2[%c0, %c0_0, %c0_1, %c0_2, %c0_3] : memref<1x1x10x18x4xbf16, #tpu.memory_space<vmem>>, vector<1x1x10x18x4xbf16>
    %1 = vector.shape_cast %0 : vector<1x1x10x18x4xbf16> to vector<10x18x4xbf16>
    %2 = vector.extract_strided_slice %1 {offsets = [0, 0, 0], sizes = [8, 16, 4], strides = [1, 1, 1]} : vector<10x18x4xbf16> to vector<8x16x4xbf16>
    %3 = vector.extract_strided_slice %1 {offsets = [0, 1, 0], sizes = [8, 16, 4], strides = [1, 1, 1]} : vector<10x18x4xbf16> to vector<8x16x4xbf16>
    %4 = vector.extract_strided_slice %1 {offsets = [0, 2, 0], sizes = [8, 16, 4], strides = [1, 1, 1]} : vector<10x18x4xbf16> to vector<8x16x4xbf16>
    %5 = vector.extract_strided_slice %1 {offsets = [1, 0, 0], sizes = [8, 16, 4], strides = [1, 1, 1]} : vector<10x18x4xbf16> to vector<8x16x4xbf16>
    %6 = vector.extract_strided_slice %1 {offsets = [1, 1, 0], sizes = [8, 16, 4], strides = [1, 1, 1]} : vector<10x18x4xbf16> to vector<8x16x4xbf16>
    %7 = vector.extract_strided_slice %1 {offsets = [1, 2, 0], sizes = [8, 16, 4], strides = [1, 1, 1]} : vector<10x18x4xbf16> to vector<8x16x4xbf16>
    %8 = vector.extract_strided_slice %1 {offsets = [2, 0, 0], sizes = [8, 16, 4], strides = [1, 1, 1]} : vector<10x18x4xbf16> to vector<8x16x4xbf16>
    %9 = vector.extract_strided_slice %1 {offsets = [2, 1, 0], sizes = [8, 16, 4], strides = [1, 1, 1]} : vector<10x18x4xbf16> to vector<8x16x4xbf16>
    %10 = vector.extract_strided_slice %1 {offsets = [2, 2, 0], sizes = [8, 16, 4], strides = [1, 1, 1]} : vector<10x18x4xbf16> to vector<8x16x4xbf16>
    %11 = tpu.concatenate %2, %3, %4, %5, %6, %7, %8, %9, %10 in 2 : vector<8x16x4xbf16>, vector<8x16x4xbf16>, vector<8x16x4xbf16>, vector<8x16x4xbf16>, vector<8x16x4xbf16>, vector<8x16x4xbf16>, vector<8x16x4xbf16>, vector<8x16x4xbf16>, vector<8x16x4xbf16> -> vector<8x16x36xbf16>
    %12 = vector.shape_cast %11 : vector<8x16x36xbf16> to vector<128x36xbf16>
    %c0_4 = arith.constant 0 : index
    %c0_5 = arith.constant 0 : index
    %13 = vector.load %arg3[%c0_4, %c0_5] : memref<36x32xbf16, #tpu.memory_space<vmem>>, vector<36x32xbf16>
    %cst = arith.constant dense<0.000000e+00> : vector<128x32xf32>
    %14 = tpu.matmul %12, %13, %cst {dimension_numbers = #tpu.dot_dimension_numbers<[1], [0], [0], [1], [0, 0, 1, 1], [], []>} : vector<128x36xbf16>, vector<36x32xbf16>, vector<128x32xf32> -> vector<128x32xf32>
    %c0_6 = arith.constant 0 : index
    %c0_7 = arith.constant 0 : index
    %15 = vector.load %arg4[%c0_6, %c0_7] : memref<1x32xf32, #tpu.memory_space<vmem>>, vector<1x32xf32>
    %16 = vector.broadcast %15 : vector<1x32xf32> to vector<128x32xf32>
    %17 = arith.addf %14, %16 : vector<128x32xf32>
    %c0_8 = arith.constant 0 : index
    %18 = memref.load %arg5[%c0_8] : memref<1xf32, #tpu.memory_space<smem>>
    %cst_9 = arith.constant 0.000000e+00 : f32
    %19 = vector.broadcast %cst_9 : f32 to vector<128x32xf32>
    %20 = arith.cmpf oge, %17, %19 : vector<128x32xf32>
    %21 = vector.broadcast %18 : f32 to vector<128x32xf32>
    %22 = arith.mulf %21, %17 : vector<128x32xf32>
    %23 = arith.select %20, %17, %22 : vector<128x32xi1>, vector<128x32xf32>
    %c0_10 = arith.constant 0 : index
    %c0_11 = arith.constant 0 : index
    %c0_12 = arith.constant 0 : index
    %c0_13 = arith.constant 0 : index
    %24 = vector.load %arg6[%c0_10, %c0_11, %c0_12, %c0_13] : memref<1x1x128x32xf32, #tpu.memory_space<vmem>>, vector<1x1x128x32xf32>
    %25 = vector.shape_cast %24 : vector<1x1x128x32xf32> to vector<128x32xf32>
    %26 = vector.shape_cast %23 : vector<128x32xf32> to vector<1x1x128x32xf32>
    tpu.vector_store %arg6[%c0_10, %c0_11, %c0_12, %c0_13], %26 {strides = array<i32>} : memref<1x1x128x32xf32, #tpu.memory_space<vmem>>, vector<1x1x128x32xf32>,
    return
  }
  func.func @transform_0(%arg0: i32, %arg1: i32) -> (i32, i32, i32, i32, i32) {
    %c0_i32 = arith.constant 0 : i32
    %c0_i32_0 = arith.constant 0 : i32
    %c0_i32_1 = arith.constant 0 : i32
    %c0_i32_2 = arith.constant 0 : i32
    return %arg0, %arg1, %c0_i32, %c0_i32_0, %c0_i32_1 : i32, i32, i32, i32, i32
  }
  func.func @transform_1(%arg0: i32, %arg1: i32) -> (i32, i32) {
    %c0_i32 = arith.constant 0 : i32
    %c0_i32_0 = arith.constant 0 : i32
    %c0_i32_1 = arith.constant 0 : i32
    return %c0_i32, %c0_i32_0 : i32, i32
  }
  func.func @transform_2(%arg0: i32, %arg1: i32) -> (i32, i32) {
    %c0_i32 = arith.constant 0 : i32
    %c0_i32_0 = arith.constant 0 : i32
    %c0_i32_1 = arith.constant 0 : i32
    return %c0_i32, %c0_i32_0 : i32, i32
  }
  func.func @transform_3(%arg0: i32, %arg1: i32) -> i32 {
    %c0_i32 = arith.constant 0 : i32
    %c0_i32_0 = arith.constant 0 : i32
    return %c0_i32 : i32
  }
  func.func @transform_4(%arg0: i32, %arg1: i32) -> (i32, i32, i32, i32) {
    %c0_i32 = arith.constant 0 : i32
    %c0_i32_0 = arith.constant 0 : i32
    %c0_i32_1 = arith.constant 0 : i32
    return %arg0, %arg1, %c0_i32, %c0_i32_0 : i32, i32, i32, i32
  }
}

</mosaic_0001>

<llo_original>
// kernel: tile.8
$region0: #{tile.8}
  #allocation0 [shape = 's32[1]{0}', space=sflag, size = 0x4, scoped, tag = 'scoped memory for tile.8']
  %s0 = inlined_call_operand.vmem [shape: f32[8], index: 0, kind: input, shape index: {}]
  %s1 = inlined_call_operand.vmem [shape: f32[4,8], index: 1, kind: output, shape index: {}]
  // Predicated region
  $region2: #{tile.8} parent=0 // pred_check
    _
  $region3: #{tile.8} parent=0 // pred_check_branch
    %3 = sbr.rel (0) target = $region5
  $region4: #{tile.8} parent=0 // pred_region
    _
  $region5: #{tile.8} parent=0 // pred_fallthru
    _
  %v4 = vld [vmem:[%s0] ss:$0 sm:$0xff]
  %5 = vst [vmem:[%s1] sm:$0xf] %v4

// kernel: tile.9
$region0: #{tile.9}
  %s0 = inlined_call_operand.vmem [shape: f32[4,8], index: 0, kind: input, shape index: {}]
  %s1 = inlined_call_operand.vmem [shape: f32[1,32], index: 1, kind: output, shape index: {}]
  $region1: #{tile.9} parent=0
    #allocation0 [shape = 'u8[4096]{0}', space=vmem, size = 0x1000, scoped, tag = 'scoped mem for output reshape']
    #allocation1 [shape = 'u8[4096]{0}', space=vmem, size = 0x1000, scoped, tag = 'scoped mem for input reshape']
    %s3 = sshll.u32 1, 4
    %s4 = ssub.s32 %s3, 1
    %v5 = vld [vmem:[%s0] sm:%s4]
    %6 = vst [vmem:[#allocation1] sm:%s4] %v5
    %v7 = vld [vmem:[#allocation1] sm:$0x1]
    %vm8 = vcmask 64512
    %9 = vst.msk [vmem:[#allocation0] sm:$0x1] %vm8, %v7
    %s10 = scalar_lea.vmem [#allocation1], 3
    %v11 = vld [vmem:[%s10] sm:$0x1]
    %12 = vrot.lane.b32.xlu0 %v11, 24
    %v13 = vpop.permute.xlu0 %12
    %vm14 = vcmask 261312
    %15 = vst.msk [vmem:[#allocation0] sm:$0x1] %vm14, %v13
    %s16 = scalar_lea.vmem [#allocation1], 2
    %v17 = vld [vmem:[%s16] sm:$0x1]
    %18 = vrot.lane.b32.xlu0 %v17, 16
    %v19 = vpop.permute.xlu0 %18
    %vm20 = vcmask 195712
    %21 = vst.msk [vmem:[#allocation0] sm:$0x1] %vm20, %v19
    %s22 = scalar_lea.vmem [#allocation1], 1
    %v23 = vld [vmem:[%s22] sm:$0x1]
    %24 = vrot.lane.b32.xlu0 %v23, 8
    %v25 = vpop.permute.xlu0 %24
    %vm26 = vcmask 130112
    %27 = vst.msk [vmem:[#allocation0] sm:$0x1] %vm26, %v25
    %s29 = sshll.u32 1, 1
    %s30 = ssub.s32 %s29, 1
    %v32 = vld [vmem:[#allocation0] sm:%s30]
    %s33 = sshll.u32 1, 1
    %s34 = ssub.s32 %s33, 1
    %35 = vst [vmem:[%s1] sm:%s34] %v32

// kernel: deconv_block_forward.1
$region0: #{deconv_block_forward.1}
  #allocation0 [shape = 'u32[]', space=smem, size = 0x4, offset = 0x4, fixed_abs, tag = 'smem constant byte address 0x4 - core index']
  #allocation1 [shape = 'u32[144,128]{1,0:T(1,128)}', space=vmem, size = 0x12000, scoped, tag = 'internal scratch']
  #allocation2 [shape = 'f32[1]{0:T(128)S(6)}', space=smem, size = 0x200, scoped, tag = 'scoped memory for deconv_block_forward.1']
  %s0 = inlined_call_operand.vmem [shape: bf16[2,2,10,18,4], index: 0, kind: input, shape index: {}]
  %s1 = inlined_call_operand.vmem [shape: bf16[36,32], index: 1, kind: input, shape index: {}]
  %s2 = inlined_call_operand.vmem [shape: f32[1,32], index: 2, kind: input, shape index: {}]
  %s3 = inlined_call_operand.<no memory space> [shape: f32[1], index: 3, kind: input, shape index: {}]
  %s4 = inlined_call_operand.vmem [shape: f32[2,2,128,32], index: 4, kind: output, shape index: {}]
  %s5 = sld [smem:[#allocation0]]
  $region49: #{deconv_block_forward.1} parent=0
    _
  %s7 = ssub.s32 1, %s5
  %s8 = scalar_select 0, %s7, %s5
  %9 = sst [smem:[#allocation2]] %s3
  loop: start=0, step=1, limit=6
  $region2: #{deconv_block_forward.1} parent=0 // loop_pre_header
    _
  $region3: #{deconv_block_forward.1} parent=0 // loop_header
    %s11 = sphi 0, %s15
    %p12 = scmp.ge.s32.totalorder %s11, 6
    %s18 = sphi 0, %s30
    %s19 = sphi 0, %s26
    %s20 = sphi 0, %s18
    %s21 = sphi 0, %s19
    %s22 = sphi 0, %s20
    %s23 = sphi 0, %s21
    %s35 = sphi 0, %s37
    %s38 = sphi 0, %s35
    %s39 = sphi 0, %s38
    %s55 = sphi 0, %s39
    %s59 = sphi 0, %s59
    %s61 = sphi 0, %s59
    %s62 = sphi 0, %s61
    %s76 = sphi 0, %s62
    %s80 = sphi 0, %s80
    %s82 = sphi 0, %s80
    %s83 = sphi 0, %s82
    %s97 = sphi 0, %s83
    %s101 = sphi 0, %s101
    %s103 = sphi 0, %s101
    %s104 = sphi 0, %s103
    %s118 = sphi 0, %s104
    %s126 = sphi 0, %s128
    %s129 = sphi 0, %s126
    %s130 = sphi 0, %s129
    %s146 = sphi 0, %s130
  $region4: #{deconv_block_forward.1} parent=0 // loop_header_branch
    %14 = sbr.rel (%p12) target = $region8
  $region5: #{deconv_block_forward.1} parent=0 // loop_body
    %s16 = ssub.s32 %s11, 1
    %s17 = ssub.s32 %s11, 2
    %s24 = sadd.s32 1, %s19
    %p25 = scmp.ge.s32.totalorder %s24, 2
    %s26 = scalar_select %p25, 0, %s24
    %s27 = sadd.s32 1, %s18
    %s28 = scalar_select %p25, %s27, %s18
    %p29 = scmp.ge.s32.totalorder %s28, 2
    %s30 = scalar_select %p29, 0, %s28
    %s31 = ssub.s32 %s18, %s30
    %s32 = ssub.s32 %s19, %s26
    %s33 = sor.u32 %s31, %s32
    %p34 = scmp.eq.s32.totalorder %s33, 0
    %s36 = sadd.s32 %s35, 1
    %s37 = scalar_select %p34, %s35, %s36
    %p40 = pneg %p34
    %p41 = scmp.eq.s32.totalorder %s11, 3
    %p42 = por %p40, %p41
    %p43 = scmp.ne.s32.totalorder %s35, %s38
    %p44 = scmp.eq.s32.totalorder %s11, 0
    %p45 = por %p43, %p44
    %p46 = scmp.ne.s32.totalorder %s35, %s38
    %p47 = scmp.eq.s32.totalorder %s16, 3
    %p48 = por %p46, %p47
    %p49 = scmp.ne.s32.totalorder %s38, %s39
    %p50 = scmp.eq.s32.totalorder %s16, 0
    %p51 = por %p49, %p50
    %p52 = scmp.ne.s32.totalorder %s38, %s39
    %p53 = scmp.eq.s32.totalorder %s17, 3
    %p54 = por %p52, %p53
    %p56 = scmp.ne.s32.totalorder %s39, %s55
    %p57 = scmp.eq.s32.totalorder %s17, 0
    %p58 = por %p56, %p57
    %s60 = sadd.s32 %s59, 1
    %p63 = scmp.eq.s32.totalorder %s11, 3
    %p64 = scmp.ne.s32.totalorder %s59, %s61
    %p65 = scmp.eq.s32.totalorder %s11, 0
    %p66 = por %p64, %p65
    %p67 = scmp.ne.s32.totalorder %s59, %s61
    %p68 = scmp.eq.s32.totalorder %s16, 3
    %p69 = por %p67, %p68
    %p70 = scmp.ne.s32.totalorder %s61, %s62
    %p71 = scmp.eq.s32.totalorder %s16, 0
    %p72 = por %p70, %p71
    %p73 = scmp.ne.s32.totalorder %s61, %s62
    %p74 = scmp.eq.s32.totalorder %s17, 3
    %p75 = por %p73, %p74
    %p77 = scmp.ne.s32.totalorder %s62, %s76
    %p78 = scmp.eq.s32.totalorder %s17, 0
    %p79 = por %p77, %p78
    %s81 = sadd.s32 %s80, 1
    %p84 = scmp.eq.s32.totalorder %s11, 3
    %p85 = scmp.ne.s32.totalorder %s80, %s82
    %p86 = scmp.eq.s32.totalorder %s11, 0
    %p87 = por %p85, %p86
    %p88 = scmp.ne.s32.totalorder %s80, %s82
    %p89 = scmp.eq.s32.totalorder %s16, 3
    %p90 = por %p88, %p89
    %p91 = scmp.ne.s32.totalorder %s82, %s83
    %p92 = scmp.eq.s32.totalorder %s16, 0
    %p93 = por %p91, %p92
    %p94 = scmp.ne.s32.totalorder %s82, %s83
    %p95 = scmp.eq.s32.totalorder %s17, 3
    %p96 = por %p94, %p95
    %p98 = scmp.ne.s32.totalorder %s83, %s97
    %p99 = scmp.eq.s32.totalorder %s17, 0
    %p100 = por %p98, %p99
    %s102 = sadd.s32 %s101, 1
    %p105 = scmp.eq.s32.totalorder %s11, 3
    %p106 = scmp.ne.s32.totalorder %s101, %s103
    %p107 = scmp.eq.s32.totalorder %s11, 0
    %p108 = por %p106, %p107
    %p109 = scmp.ne.s32.totalorder %s101, %s103
    %p110 = scmp.eq.s32.totalorder %s16, 3
    %p111 = por %p109, %p110
    %p112 = scmp.ne.s32.totalorder %s103, %s104
    %p113 = scmp.eq.s32.totalorder %s16, 0
    %p114 = por %p112, %p113
    %p115 = scmp.ne.s32.totalorder %s103, %s104
    %p116 = scmp.eq.s32.totalorder %s17, 3
    %p117 = por %p115, %p116
    %p119 = scmp.ne.s32.totalorder %s104, %s118
    %p120 = scmp.eq.s32.totalorder %s17, 0
    %p121 = por %p119, %p120
    %s122 = ssub.s32 %s18, %s30
    %s123 = ssub.s32 %s19, %s26
    %s124 = sor.u32 %s122, %s123
    %p125 = scmp.eq.s32.totalorder %s124, 0
    %s127 = sadd.s32 %s126, 1
    %s128 = scalar_select %p125, %s126, %s127
    %p131 = pneg %p125
    %p132 = scmp.eq.s32.totalorder %s11, 3
    %p133 = por %p131, %p132
    %p134 = scmp.ne.s32.totalorder %s126, %s129
    %p135 = scmp.eq.s32.totalorder %s11, 0
    %p136 = por %p134, %p135
    %p137 = scmp.ne.s32.totalorder %s126, %s129
    %p138 = scmp.eq.s32.totalorder %s16, 3
    %p139 = por %p137, %p138
    %p140 = scmp.ne.s32.totalorder %s129, %s130
    %p141 = scmp.eq.s32.totalorder %s16, 0
    %p142 = por %p140, %p141
    %p143 = scmp.ne.s32.totalorder %s129, %s130
    %p144 = scmp.eq.s32.totalorder %s17, 3
    %p145 = por %p143, %p144
    %p147 = scmp.ne.s32.totalorder %s130, %s146
    %p148 = scmp.eq.s32.totalorder %s17, 0
    %p149 = por %p147, %p148
    %p150 = scmp.le.s32.totalorder 1, %s11
    %p151 = scmp.lt.s32.totalorder %s11, 5
    %p152 = pnand %p150, %p151
    %p153 = pneg %p152
    // Predicated region
    $region9: #{deconv_block_forward.1} parent=5 // pred_check
      _
    $region10: #{deconv_block_forward.1} parent=5 // pred_check_branch
      %155 = sbr.rel (%p152) target = $region12
    $region11: #{deconv_block_forward.1} parent=5 // pred_region
      %s156 = ssub.s32 %s11, 1
      // Predicated region
      $region13: #{deconv_block_forward.1} parent=11 // pred_check
        %p157 = pneg %p72
      $region14: #{deconv_block_forward.1} parent=11 // pred_check_branch
        %159 = sbr.rel (%p157) target = $region16
      $region15: #{deconv_block_forward.1} parent=11 // pred_region
        _
      $region16: #{deconv_block_forward.1} parent=11 // pred_fallthru
        _
      // Predicated region
      $region17: #{deconv_block_forward.1} parent=11 // pred_check
        %p160 = pneg %p93
      $region18: #{deconv_block_forward.1} parent=11 // pred_check_branch
        %162 = sbr.rel (%p160) target = $region20
      $region19: #{deconv_block_forward.1} parent=11 // pred_region
        _
      $region20: #{deconv_block_forward.1} parent=11 // pred_fallthru
        _
      // Predicated region
      $region21: #{deconv_block_forward.1} parent=11 // pred_check
        %p163 = pneg %p114
      $region22: #{deconv_block_forward.1} parent=11 // pred_check_branch
        %165 = sbr.rel (%p163) target = $region24
      $region23: #{deconv_block_forward.1} parent=11 // pred_region
        _
      $region24: #{deconv_block_forward.1} parent=11 // pred_fallthru
        _
    $region12: #{deconv_block_forward.1} parent=5 // pred_fallthru
      _
    %p166 = scmp.lt.s32.totalorder %s11, 4
    // Predicated region
    $region25: #{deconv_block_forward.1} parent=5 // pred_check
      %p167 = pneg %p166
    $region26: #{deconv_block_forward.1} parent=5 // pred_check_branch
      %169 = sbr.rel (%p167) target = $region28
    $region27: #{deconv_block_forward.1} parent=5 // pred_region
      // Predicated region
      $region29: #{deconv_block_forward.1} parent=27 // pred_check
        %p170 = pneg %p45
      $region30: #{deconv_block_forward.1} parent=27 // pred_check_branch
        %172 = sbr.rel (%p170) target = $region32
      $region31: #{deconv_block_forward.1} parent=27 // pred_region
        %p173 = scmp.lt.s32.totalorder %s18, 1
        %s174 = scalar_select %p173, %s18, 1
        %p175 = scmp.lt.s32.totalorder %s19, 1
        %s176 = scalar_select %p175, %s19, 1
        %s177 = smul.addr %s176, 30
        %s178 = smul.addr %s174, 60
        %s179 = sadd.s32 %s177, %s178
        %s180 = smul.addr %s179, 4
        %s181 = scalar_lea.vmem %s0, %s180
      $region32: #{deconv_block_forward.1} parent=27 // pred_fallthru
        _
    $region28: #{deconv_block_forward.1} parent=5 // pred_fallthru
      _
    %p182 = scmp.le.s32.totalorder 1, %s11
    %p183 = scmp.lt.s32.totalorder %s11, 5
    %p184 = pnand %p182, %p183
    %p185 = pneg %p184
    // Predicated region
    $region33: #{deconv_block_forward.1} parent=5 // pred_check
      _
    $region34: #{deconv_block_forward.1} parent=5 // pred_check_branch
      %187 = sbr.rel (%p184) target = $region36
    $region35: #{deconv_block_forward.1} parent=5 // pred_region
      %s188 = ssub.s32 %s11, 1
      %p189 = scmp.lt.s32.totalorder %s20, 1
      %s190 = scalar_select %p189, %s20, 1
      %p191 = scmp.lt.s32.totalorder %s21, 1
      %s192 = scalar_select %p191, %s21, 1
      %s193 = smul.addr %s192, 30
      %s194 = smul.addr %s190, 60
      %s195 = sadd.s32 %s193, %s194
      %s196 = smul.addr %s195, 4
      %s197 = scalar_lea.vmem %s0, %s196
      %p198 = pneg %p51
      %p199 = pneg %p48
      %p200 = pneg %p72
      %p201 = pneg %p69
      %p202 = pneg %p93
      %p203 = pneg %p90
      %p204 = pneg %p114
      %p205 = pneg %p111
      %p206 = pneg %p142
      %p207 = pneg %p139
      %p208 = scmp.lt.s32.totalorder %s20, 1
      %s209 = scalar_select %p208, %s20, 1
      %p210 = scmp.lt.s32.totalorder %s21, 1
      %s211 = scalar_select %p210, %s21, 1
      %s212 = smul.addr %s211, 16
      %s213 = smul.addr %s209, 32
      %s214 = sadd.s32 %s212, %s213
      %s215 = smul.addr %s214, 8
      %s216 = scalar_lea.vmem %s4, %s215
      %p217 = scmp.lt.s32.totalorder %s20, 1
      %s218 = scalar_select %p217, %s20, 1
      %p219 = scmp.lt.s32.totalorder %s21, 1
      %s220 = scalar_select %p219, %s21, 1
      %s221 = smul.addr %s220, 30
      %s222 = smul.addr %s218, 60
      %s223 = sadd.s32 %s221, %s222
      %s224 = smul.addr %s223, 4
      %s225 = scalar_lea.vmem %s0, %s224
      %p226 = scmp.lt.s32.totalorder %s20, 1
      %s227 = scalar_select %p226, %s20, 1
      %p228 = scmp.lt.s32.totalorder %s21, 1
      %s229 = scalar_select %p228, %s21, 1
      %s230 = smul.addr %s229, 16
      %s231 = smul.addr %s227, 32
      %s232 = sadd.s32 %s230, %s231
      %s233 = smul.addr %s232, 8
      %s234 = scalar_lea.vmem %s4, %s233
      %v236 = vld [vmem:[%s225] sm:$0xf]
      %v237 = vld [vmem:[%s225 + $0x4] sm:$0xf]
      %v238 = vld [vmem:[%s225 + $0x8] sm:$0x1]
      %v239 = vld [vmem:[%s225 + $0xc] sm:$0xf]
      %v240 = vld [vmem:[%s225 + $0x10] sm:$0xf]
      %v241 = vld [vmem:[%s225 + $0x14] sm:$0x1]
      %v242 = vld [vmem:[%s225 + $0x18] sm:$0xf]
      %v243 = vld [vmem:[%s225 + $0x1c] sm:$0xf]
      %v244 = vld [vmem:[%s225 + $0x20] sm:$0x1]
      %v245 = vld [vmem:[%s225 + $0x24] sm:$0xf]
      %v246 = vld [vmem:[%s225 + $0x28] sm:$0xf]
      %v247 = vld [vmem:[%s225 + $0x2c] sm:$0x1]
      %v248 = vld [vmem:[%s225 + $0x30] sm:$0xf]
      %v249 = vld [vmem:[%s225 + $0x34] sm:$0xf]
      %v250 = vld [vmem:[%s225 + $0x38] sm:$0x1]
      %v251 = vld [vmem:[%s225 + $0x3c] sm:$0xf]
      %v252 = vld [vmem:[%s225 + $0x40] sm:$0xf]
      %v253 = vld [vmem:[%s225 + $0x44] sm:$0x1]
      %v254 = vld [vmem:[%s225 + $0x48] sm:$0xf]
      %v255 = vld [vmem:[%s225 + $0x4c] sm:$0xf]
      %v256 = vld [vmem:[%s225 + $0x50] sm:$0x1]
      %v257 = vld [vmem:[%s225 + $0x54] sm:$0xf]
      %v258 = vld [vmem:[%s225 + $0x58] sm:$0xf]
      %v259 = vld [vmem:[%s225 + $0x5c] sm:$0x1]
      %v260 = vld [vmem:[%s225 + $0x60] sm:$0xf]
      %v261 = vld [vmem:[%s225 + $0x64] sm:$0xf]
      %v262 = vld [vmem:[%s225 + $0x68] sm:$0x1]
      %v263 = vld [vmem:[%s225 + $0x6c] sm:$0xf]
      %v264 = vld [vmem:[%s225 + $0x70] sm:$0xf]
      %v265 = vld [vmem:[%s225 + $0x74] sm:$0x1]
      %v282 = vunpack.c.l.b16 %v236
      %v283 = vunpack.c.l.b16 %v237
      %v284 = vunpack.c.l.b16 %v239
      %v285 = vunpack.c.l.b16 %v240
      %v286 = vunpack.c.l.b16 %v242
      %v287 = vunpack.c.l.b16 %v243
      %v288 = vunpack.c.l.b16 %v245
      %v289 = vunpack.c.l.b16 %v246
      %v290 = vunpack.c.l.b16 %v248
      %v291 = vunpack.c.l.b16 %v249
      %v292 = vunpack.c.l.b16 %v251
      %v293 = vunpack.c.l.b16 %v252
      %v294 = vunpack.c.l.b16 %v254
      %v295 = vunpack.c.l.b16 %v255
      %v296 = vunpack.c.l.b16 %v257
      %v297 = vunpack.c.l.b16 %v258
      %v298 = vpack.c.b16 %v283, %v282
      %v299 = vpack.c.b16 %v285, %v284
      %v300 = vpack.c.b16 %v287, %v286
      %v301 = vpack.c.b16 %v289, %v288
      %v302 = vpack.c.b16 %v291, %v290
      %v303 = vpack.c.b16 %v293, %v292
      %v304 = vpack.c.b16 %v295, %v294
      %v305 = vpack.c.b16 %v297, %v296
      %v314 = vunpack.c.l.b16 %v238
      %v315 = vunpack.c.l.b16 %v241
      %v316 = vunpack.c.l.b16 %v244
      %v317 = vunpack.c.l.b16 %v247
      %v318 = vunpack.c.l.b16 %v250
      %v319 = vunpack.c.l.b16 %v253
      %v320 = vunpack.c.l.b16 %v256
      %v321 = vunpack.c.l.b16 %v259
      %v322 = vpack.c.b16 %v314, %v314
      %v323 = vpack.c.b16 %v315, %v315
      %v324 = vpack.c.b16 %v316, %v316
      %v325 = vpack.c.b16 %v317, %v317
      %v326 = vpack.c.b16 %v318, %v318
      %v327 = vpack.c.b16 %v319, %v319
      %v328 = vpack.c.b16 %v320, %v320
      %v329 = vpack.c.b16 %v321, %v321
      %vm330 = vsmask.f32 7424
      %v332 = vshrl.u32 %v298, 16
      %v334 = vshll.u32 %v298, 16
      %v336 = vrot.slane %v334, 1
      %v337 = vor.u32 %v332, %v336
      %v339 = vshll.u32 %v322, 16
      %v341 = vrot.slane %v339, 1
      %v342 = vsel %vm330, %v337, %v341
      %v344 = vshrl.u32 %v299, 16
      %v346 = vshll.u32 %v299, 16
      %v348 = vrot.slane %v346, 1
      %v349 = vor.u32 %v344, %v348
      %v351 = vshll.u32 %v323, 16
      %v353 = vrot.slane %v351, 1
      %v354 = vsel %vm330, %v349, %v353
      %v356 = vshrl.u32 %v300, 16
      %v358 = vshll.u32 %v300, 16
      %v360 = vrot.slane %v358, 1
      %v361 = vor.u32 %v356, %v360
      %v363 = vshll.u32 %v324, 16
      %v365 = vrot.slane %v363, 1
      %v366 = vsel %vm330, %v361, %v365
      %v368 = vshrl.u32 %v301, 16
      %v370 = vshll.u32 %v301, 16
      %v372 = vrot.slane %v370, 1
      %v373 = vor.u32 %v368, %v372
      %v375 = vshll.u32 %v325, 16
      %v377 = vrot.slane %v375, 1
      %v378 = vsel %vm330, %v373, %v377
      %v380 = vshrl.u32 %v302, 16
      %v382 = vshll.u32 %v302, 16
      %v384 = vrot.slane %v382, 1
      %v385 = vor.u32 %v380, %v384
      %v387 = vshll.u32 %v326, 16
      %v389 = vrot.slane %v387, 1
      %v390 = vsel %vm330, %v385, %v389
      %v392 = vshrl.u32 %v303, 16
      %v394 = vshll.u32 %v303, 16
      %v396 = vrot.slane %v394, 1
      %v397 = vor.u32 %v392, %v396
      %v399 = vshll.u32 %v327, 16
      %v401 = vrot.slane %v399, 1
      %v402 = vsel %vm330, %v397, %v401
      %v404 = vshrl.u32 %v304, 16
      %v406 = vshll.u32 %v304, 16
      %v408 = vrot.slane %v406, 1
      %v409 = vor.u32 %v404, %v408
      %v411 = vshll.u32 %v328, 16
      %v413 = vrot.slane %v411, 1
      %v414 = vsel %vm330, %v409, %v413
      %v416 = vshrl.u32 %v305, 16
      %v418 = vshll.u32 %v305, 16
      %v420 = vrot.slane %v418, 1
      %v421 = vor.u32 %v416, %v420
      %v423 = vshll.u32 %v329, 16
      %v425 = vrot.slane %v423, 1
      %v426 = vsel %vm330, %v421, %v425
      %427 = vrot.lane.b32.xlu0 %v342, 4
      %v428 = vpop.permute.xlu0 %427
      %429 = vrot.lane.b32.xlu0 %v354, 4
      %v430 = vpop.permute.xlu0 %429
      %431 = vrot.lane.b32.xlu0 %v366, 4
      %v432 = vpop.permute.xlu0 %431
      %433 = vrot.lane.b32.xlu0 %v378, 4
      %v434 = vpop.permute.xlu0 %433
      %435 = vrot.lane.b32.xlu0 %v390, 4
      %v436 = vpop.permute.xlu0 %435
      %437 = vrot.lane.b32.xlu0 %v402, 4
      %v438 = vpop.permute.xlu0 %437
      %439 = vrot.lane.b32.xlu0 %v414, 4
      %v440 = vpop.permute.xlu0 %439
      %441 = vrot.lane.b32.xlu0 %v426, 4
      %v442 = vpop.permute.xlu0 %441
      %vm443 = vcmask 1046528
      %v444 = vrot.slane %v298, 1
      %v445 = vrot.slane %v322, 1
      %v446 = vsel %vm443, %v444, %v445
      %v447 = vrot.slane %v299, 1
      %v448 = vrot.slane %v323, 1
      %v449 = vsel %vm443, %v447, %v448
      %v450 = vrot.slane %v300, 1
      %v451 = vrot.slane %v324, 1
      %v452 = vsel %vm443, %v450, %v451
      %v453 = vrot.slane %v301, 1
      %v454 = vrot.slane %v325, 1
      %v455 = vsel %vm443, %v453, %v454
      %v456 = vrot.slane %v302, 1
      %v457 = vrot.slane %v326, 1
      %v458 = vsel %vm443, %v456, %v457
      %v459 = vrot.slane %v303, 1
      %v460 = vrot.slane %v327, 1
      %v461 = vsel %vm443, %v459, %v460
      %v462 = vrot.slane %v304, 1
      %v463 = vrot.slane %v328, 1
      %v464 = vsel %vm443, %v462, %v463
      %v465 = vrot.slane %v305, 1
      %v466 = vrot.slane %v329, 1
      %v467 = vsel %vm443, %v465, %v466
      %468 = vrot.lane.b32.xlu0 %v446, 8
      %v469 = vpop.permute.xlu0 %468
      %470 = vrot.lane.b32.xlu0 %v449, 8
      %v471 = vpop.permute.xlu0 %470
      %472 = vrot.lane.b32.xlu0 %v452, 8
      %v473 = vpop.permute.xlu0 %472
      %474 = vrot.lane.b32.xlu0 %v455, 8
      %v475 = vpop.permute.xlu0 %474
      %476 = vrot.lane.b32.xlu0 %v458, 8
      %v477 = vpop.permute.xlu0 %476
      %478 = vrot.lane.b32.xlu0 %v461, 8
      %v479 = vpop.permute.xlu0 %478
      %480 = vrot.lane.b32.xlu0 %v464, 8
      %v481 = vpop.permute.xlu0 %480
      %482 = vrot.lane.b32.xlu0 %v467, 8
      %v483 = vpop.permute.xlu0 %482
      %v486 = vunpack.c.l.b16 %v260
      %v487 = vunpack.c.l.b16 %v261
      %v488 = vpack.c.b16 %v487, %v486
      %489 = vrot.lane.b32.xlu0 %v299, 12
      %v490 = vpop.permute.xlu0 %489
      %491 = vrot.lane.b32.xlu0 %v300, 12
      %v492 = vpop.permute.xlu0 %491
      %493 = vrot.lane.b32.xlu0 %v301, 12
      %v494 = vpop.permute.xlu0 %493
      %495 = vrot.lane.b32.xlu0 %v302, 12
      %v496 = vpop.permute.xlu0 %495
      %497 = vrot.lane.b32.xlu0 %v303, 12
      %v498 = vpop.permute.xlu0 %497
      %499 = vrot.lane.b32.xlu0 %v304, 12
      %v500 = vpop.permute.xlu0 %499
      %501 = vrot.lane.b32.xlu0 %v305, 12
      %v502 = vpop.permute.xlu0 %501
      %503 = vrot.lane.b32.xlu0 %v488, 12
      %v504 = vpop.permute.xlu0 %503
      %v506 = vunpack.c.l.b16 %v262
      %v507 = vpack.c.b16 %v506, %v506
      %v509 = vshrl.u32 %v488, 16
      %v511 = vshll.u32 %v488, 16
      %v513 = vrot.slane %v511, 1
      %v514 = vor.u32 %v509, %v513
      %v516 = vshll.u32 %v507, 16
      %v518 = vrot.slane %v516, 1
      %v519 = vsel %vm330, %v514, %v518
      %520 = vrot.lane.b32.xlu0 %v354, 16
      %v521 = vpop.permute.xlu0 %520
      %522 = vrot.lane.b32.xlu0 %v366, 16
      %v523 = vpop.permute.xlu0 %522
      %524 = vrot.lane.b32.xlu0 %v378, 16
      %v525 = vpop.permute.xlu0 %524
      %526 = vrot.lane.b32.xlu0 %v390, 16
      %v527 = vpop.permute.xlu0 %526
      %528 = vrot.lane.b32.xlu0 %v402, 16
      %v529 = vpop.permute.xlu0 %528
      %530 = vrot.lane.b32.xlu0 %v414, 16
      %v531 = vpop.permute.xlu0 %530
      %532 = vrot.lane.b32.xlu0 %v426, 16
      %v533 = vpop.permute.xlu0 %532
      %534 = vrot.lane.b32.xlu0 %v519, 16
      %v535 = vpop.permute.xlu0 %534
      %v536 = vrot.slane %v488, 1
      %v537 = vrot.slane %v507, 1
      %v538 = vsel %vm443, %v536, %v537
      %539 = vrot.lane.b32.xlu0 %v449, 20
      %v540 = vpop.permute.xlu0 %539
      %541 = vrot.lane.b32.xlu0 %v452, 20
      %v542 = vpop.permute.xlu0 %541
      %543 = vrot.lane.b32.xlu0 %v455, 20
      %v544 = vpop.permute.xlu0 %543
      %545 = vrot.lane.b32.xlu0 %v458, 20
      %v546 = vpop.permute.xlu0 %545
      %547 = vrot.lane.b32.xlu0 %v461, 20
      %v548 = vpop.permute.xlu0 %547
      %549 = vrot.lane.b32.xlu0 %v464, 20
      %v550 = vpop.permute.xlu0 %549
      %551 = vrot.lane.b32.xlu0 %v467, 20
      %v552 = vpop.permute.xlu0 %551
      %553 = vrot.lane.b32.xlu0 %v538, 20
      %v554 = vpop.permute.xlu0 %553
      %v557 = vunpack.c.l.b16 %v263
      %v558 = vunpack.c.l.b16 %v264
      %v559 = vpack.c.b16 %v558, %v557
      %560 = vrot.lane.b32.xlu0 %v300, 24
      %v561 = vpop.permute.xlu0 %560
      %562 = vrot.lane.b32.xlu0 %v301, 24
      %v563 = vpop.permute.xlu0 %562
      %564 = vrot.lane.b32.xlu0 %v302, 24
      %v565 = vpop.permute.xlu0 %564
      %566 = vrot.lane.b32.xlu0 %v303, 24
      %v567 = vpop.permute.xlu0 %566
      %568 = vrot.lane.b32.xlu0 %v304, 24
      %v569 = vpop.permute.xlu0 %568
      %570 = vrot.lane.b32.xlu0 %v305, 24
      %v571 = vpop.permute.xlu0 %570
      %572 = vrot.lane.b32.xlu0 %v488, 24
      %v573 = vpop.permute.xlu0 %572
      %574 = vrot.lane.b32.xlu0 %v559, 24
      %v575 = vpop.permute.xlu0 %574
      %v577 = vunpack.c.l.b16 %v265
      %v578 = vpack.c.b16 %v577, %v577
      %v580 = vshrl.u32 %v559, 16
      %v582 = vshll.u32 %v559, 16
      %v584 = vrot.slane %v582, 1
      %v585 = vor.u32 %v580, %v584
      %v587 = vshll.u32 %v578, 16
      %v589 = vrot.slane %v587, 1
      %v590 = vsel %vm330, %v585, %v589
      %591 = vrot.lane.b32.xlu0 %v366, 28
      %v592 = vpop.permute.xlu0 %591
      %593 = vrot.lane.b32.xlu0 %v378, 28
      %v594 = vpop.permute.xlu0 %593
      %595 = vrot.lane.b32.xlu0 %v390, 28
      %v596 = vpop.permute.xlu0 %595
      %597 = vrot.lane.b32.xlu0 %v402, 28
      %v598 = vpop.permute.xlu0 %597
      %599 = vrot.lane.b32.xlu0 %v414, 28
      %v600 = vpop.permute.xlu0 %599
      %601 = vrot.lane.b32.xlu0 %v426, 28
      %v602 = vpop.permute.xlu0 %601
      %603 = vrot.lane.b32.xlu0 %v519, 28
      %v604 = vpop.permute.xlu0 %603
      %605 = vrot.lane.b32.xlu0 %v590, 28
      %v606 = vpop.permute.xlu0 %605
      %v607 = vrot.slane %v559, 1
      %v608 = vrot.slane %v578, 1
      %v609 = vsel %vm443, %v607, %v608
      %610 = vrot.lane.b32.xlu0 %v452, 32
      %v611 = vpop.permute.xlu0 %610
      %612 = vrot.lane.b32.xlu0 %v455, 32
      %v613 = vpop.permute.xlu0 %612
      %614 = vrot.lane.b32.xlu0 %v458, 32
      %v615 = vpop.permute.xlu0 %614
      %616 = vrot.lane.b32.xlu0 %v461, 32
      %v617 = vpop.permute.xlu0 %616
      %618 = vrot.lane.b32.xlu0 %v464, 32
      %v619 = vpop.permute.xlu0 %618
      %620 = vrot.lane.b32.xlu0 %v467, 32
      %v621 = vpop.permute.xlu0 %620
      %622 = vrot.lane.b32.xlu0 %v538, 32
      %v623 = vpop.permute.xlu0 %622
      %624 = vrot.lane.b32.xlu0 %v609, 32
      %v625 = vpop.permute.xlu0 %624
      %vm626 = vcmask 31744
      %v628 = vsel %vm626, %v298, %v428
      %v630 = vsel %vm626, %v299, %v430
      %v632 = vsel %vm626, %v300, %v432
      %v634 = vsel %vm626, %v301, %v434
      %v636 = vsel %vm626, %v302, %v436
      %v638 = vsel %vm626, %v303, %v438
      %v640 = vsel %vm626, %v304, %v440
      %v642 = vsel %vm626, %v305, %v442
      %vm643 = vcmask 64512
      %v645 = vsel %vm643, %v628, %v469
      %v647 = vsel %vm643, %v630, %v471
      %v649 = vsel %vm643, %v632, %v473
      %v651 = vsel %vm643, %v634, %v475
      %v653 = vsel %vm643, %v636, %v477
      %v655 = vsel %vm643, %v638, %v479
      %v657 = vsel %vm643, %v640, %v481
      %v659 = vsel %vm643, %v642, %v483
      %vm660 = vcmask 97280
      %v662 = vsel %vm660, %v645, %v490
      %v664 = vsel %vm660, %v647, %v492
      %v666 = vsel %vm660, %v649, %v494
      %v668 = vsel %vm660, %v651, %v496
      %v670 = vsel %vm660, %v653, %v498
      %v672 = vsel %vm660, %v655, %v500
      %v674 = vsel %vm660, %v657, %v502
      %v676 = vsel %vm660, %v659, %v504
      %vm677 = vcmask 130048
      %v679 = vsel %vm677, %v662, %v521
      %v681 = vsel %vm677, %v664, %v523
      %v683 = vsel %vm677, %v666, %v525
      %v685 = vsel %vm677, %v668, %v527
      %v687 = vsel %vm677, %v670, %v529
      %v689 = vsel %vm677, %v672, %v531
      %v691 = vsel %vm677, %v674, %v533
      %v693 = vsel %vm677, %v676, %v535
      %vm694 = vcmask 162816
      %v696 = vsel %vm694, %v679, %v540
      %v698 = vsel %vm694, %v681, %v542
      %v700 = vsel %vm694, %v683, %v544
      %v702 = vsel %vm694, %v685, %v546
      %v704 = vsel %vm694, %v687, %v548
      %v706 = vsel %vm694, %v689, %v550
      %v708 = vsel %vm694, %v691, %v552
      %v710 = vsel %vm694, %v693, %v554
      %vm711 = vcmask 195584
      %v713 = vsel %vm711, %v696, %v561
      %v715 = vsel %vm711, %v698, %v563
      %v717 = vsel %vm711, %v700, %v565
      %v719 = vsel %vm711, %v702, %v567
      %v721 = vsel %vm711, %v704, %v569
      %v723 = vsel %vm711, %v706, %v571
      %v725 = vsel %vm711, %v708, %v573
      %v727 = vsel %vm711, %v710, %v575
      %vm728 = vcmask 228352
      %v730 = vsel %vm728, %v713, %v592
      %v732 = vsel %vm728, %v715, %v594
      %v734 = vsel %vm728, %v717, %v596
      %v736 = vsel %vm728, %v719, %v598
      %v738 = vsel %vm728, %v721, %v600
      %v740 = vsel %vm728, %v723, %v602
      %v742 = vsel %vm728, %v725, %v604
      %v744 = vsel %vm728, %v727, %v606
      %vm745 = vcmask 261120
      %v747 = vsel %vm745, %v730, %v611
      %v749 = vsel %vm745, %v732, %v613
      %v751 = vsel %vm745, %v734, %v615
      %v753 = vsel %vm745, %v736, %v617
      %v755 = vsel %vm745, %v738, %v619
      %v757 = vsel %vm745, %v740, %v621
      %v759 = vsel %vm745, %v742, %v623
      %v761 = vsel %vm745, %v744, %v625
      %v762 = vld [vmem:[%s1] sm:$0xf]
      %v763 = vld [vmem:[%s1 + $0x4] sm:$0xf]
      %v764 = vld [vmem:[%s1 + $0x8] sm:$0xf]
      %v765 = vld [vmem:[%s1 + $0xc] sm:$0xf]
      %v766 = vld [vmem:[%s1 + $0x10] sm:$0x3]
      %v767 = vld [vmem:[%s2] sm:$0x1]
      %v769 = vlaneseq
      %v770 = vshrl.u32 %v769, 7
      %v771 = vsub.s32 0, %v770
      %v772 = vrot.slane %v767, %v771
      %v779 = vunpack.c.l.b16 %v762
      %v780 = vunpack.c.l.b16 %v763
      %v781 = vunpack.c.l.b16 %v764
      %v782 = vunpack.c.l.b16 %v765
      %v783 = vunpack.c.l.b16 %v766
      %v784 = vpack.c.b16 %v780, %v779
      %v785 = vpack.c.b16 %v782, %v781
      %v786 = vpack.c.b16 %v783, %v783
      %vm789 = vcmask 293888
      %v790 = vsel %vm789, %v747, 0
      %v792 = vsel %vm789, %v749, 0
      %v794 = vsel %vm789, %v751, 0
      %v796 = vsel %vm789, %v753, 0
      %v798 = vsel %vm789, %v755, 0
      %v800 = vsel %vm789, %v757, 0
      %v802 = vsel %vm789, %v759, 0
      %v804 = vsel %vm789, %v761, 0
      %vm806 = vcmask 1041408
      %v808 = vsel %vm806, %v786, 0
      %810 = vmatprep.subr.bf16.mxu0 0
      %811 = vmatpush1.bf16.msra.mxu0 0
      %812 = vmatprep.subr.bf16.mxu0 0
      %813 = vmatpush1.bf16.msra.mxu0 0
      %814 = vmatprep.subr.bf16.mxu0 0
      %815 = vmatpush1.bf16.msra.mxu0 0
      %816 = vmatprep.subr.bf16.mxu0 0
      %817 = vmatpush1.bf16.msra.mxu0 0
      %818 = vmatprep.subr.bf16.mxu0 0
      %819 = vmatpush1.bf16.msra.mxu0 0
      %820 = vmatprep.subr.bf16.mxu0 0
      %821 = vmatpush1.bf16.msra.mxu0 %v808
      %822 = vmatprep.subr.bf16.mxu0 0
      %823 = vmatpush1.bf16.msra.mxu0 %v785
      %824 = vmatprep.subr.bf16.mxu0 0
      %825 = vmatpush1.bf16.msra.mxu0 %v784
      %826 = vmatprep.subr.bf16.mxu0 0
      %827 = vmatpush2.bf16.msra.mxu0 0
      %828 = vmatprep.subr.bf16.mxu0 0
      %829 = vmatpush2.bf16.msra.mxu0 0
      %830 = vmatprep.subr.bf16.mxu0 0
      %831 = vmatpush2.bf16.msra.mxu0 0
      %832 = vmatprep.subr.bf16.mxu0 0
      %833 = vmatpush2.bf16.msra.mxu0 0
      %834 = vmatprep.subr.bf16.mxu0 0
      %835 = vmatpush2.bf16.msra.mxu0 0
      %836 = vmatprep.subr.bf16.mxu0 0
      %837 = vmatpush2.bf16.msra.mxu0 0
      %838 = vmatprep.subr.bf16.mxu0 0
      %839 = vmatpush2.bf16.msra.mxu0 0
      %840 = vmatprep.subr.bf16.mxu0 0
      %841 = vmatpush2.bf16.msra.mxu0 0
      %842 = vmatprep.mubr.bf16.mxu0 0
      %843 = vmatmul.mubr.bf16.gmra.mxu0 %v790
      %v844 = vpop.f32.mrf.mxu0
      %v845 = vadd.f32 %v772, %v844
      %v846 = vpop.f32.mrf.mxu0
      %v847 = vpop.f32.mrf.mxu0
      %v848 = vadd.f32 %v772, %v847
      %v849 = vpop.f32.mrf.mxu0
      %850 = vmatprep.mubr.bf16.mxu0 0
      %851 = vmatmul.mubr.bf16.gmra.mxu0 %v792
      %v852 = vpop.f32.mrf.mxu0
      %v853 = vadd.f32 %v772, %v852
      %v854 = vpop.f32.mrf.mxu0
      %v855 = vpop.f32.mrf.mxu0
      %v856 = vadd.f32 %v772, %v855
      %v857 = vpop.f32.mrf.mxu0
      %858 = vmatprep.mubr.bf16.mxu0 0
      %859 = vmatmul.mubr.bf16.gmra.mxu0 %v794
      %v860 = vpop.f32.mrf.mxu0
      %v861 = vadd.f32 %v772, %v860
      %v862 = vpop.f32.mrf.mxu0
      %v863 = vpop.f32.mrf.mxu0
      %v864 = vadd.f32 %v772, %v863
      %v865 = vpop.f32.mrf.mxu0
      %866 = vmatprep.mubr.bf16.mxu0 0
      %867 = vmatmul.mubr.bf16.gmra.mxu0 %v796
      %v868 = vpop.f32.mrf.mxu0
      %v869 = vadd.f32 %v772, %v868
      %v870 = vpop.f32.mrf.mxu0
      %v871 = vpop.f32.mrf.mxu0
      %v872 = vadd.f32 %v772, %v871
      %v873 = vpop.f32.mrf.mxu0
      %874 = vmatprep.mubr.bf16.mxu0 0
      %875 = vmatmul.mubr.bf16.gmra.mxu0 %v798
      %v876 = vpop.f32.mrf.mxu0
      %v877 = vadd.f32 %v772, %v876
      %v878 = vpop.f32.mrf.mxu0
      %v879 = vpop.f32.mrf.mxu0
      %v880 = vadd.f32 %v772, %v879
      %v881 = vpop.f32.mrf.mxu0
      %882 = vmatprep.mubr.bf16.mxu0 0
      %883 = vmatmul.mubr.bf16.gmra.mxu0 %v800
      %v884 = vpop.f32.mrf.mxu0
      %v885 = vadd.f32 %v772, %v884
      %v886 = vpop.f32.mrf.mxu0
      %v887 = vpop.f32.mrf.mxu0
      %v888 = vadd.f32 %v772, %v887
      %v889 = vpop.f32.mrf.mxu0
      %890 = vmatprep.mubr.bf16.mxu0 0
      %891 = vmatmul.mubr.bf16.gmra.mxu0 %v802
      %v892 = vpop.f32.mrf.mxu0
      %v893 = vadd.f32 %v772, %v892
      %v894 = vpop.f32.mrf.mxu0
      %v895 = vpop.f32.mrf.mxu0
      %v896 = vadd.f32 %v772, %v895
      %v897 = vpop.f32.mrf.mxu0
      %898 = vmatprep.mubr.bf16.mxu0 0
      %899 = vmatmul.mubr.bf16.gmra.mxu0 %v804
      %v900 = vpop.f32.mrf.mxu0
      %v901 = vadd.f32 %v772, %v900
      %v902 = vpop.f32.mrf.mxu0
      %v903 = vpop.f32.mrf.mxu0
      %v904 = vadd.f32 %v772, %v903
      %v905 = vpop.f32.mrf.mxu0
      %906 = vdwg.mxu0
      %s907 = sld [smem:[#allocation2]]
      %vm908 = vcmp.ge.f32.partialorder %v845, 0.0
      %vm909 = vcmp.ge.f32.partialorder %v848, 0.0
      %vm910 = vcmp.ge.f32.partialorder %v853, 0.0
      %vm911 = vcmp.ge.f32.partialorder %v856, 0.0
      %vm912 = vcmp.ge.f32.partialorder %v861, 0.0
      %vm913 = vcmp.ge.f32.partialorder %v864, 0.0
      %vm914 = vcmp.ge.f32.partialorder %v869, 0.0
      %vm915 = vcmp.ge.f32.partialorder %v872, 0.0
      %vm916 = vcmp.ge.f32.partialorder %v877, 0.0
      %vm917 = vcmp.ge.f32.partialorder %v880, 0.0
      %vm918 = vcmp.ge.f32.partialorder %v885, 0.0
      %vm919 = vcmp.ge.f32.partialorder %v888, 0.0
      %vm920 = vcmp.ge.f32.partialorder %v893, 0.0
      %vm921 = vcmp.ge.f32.partialorder %v896, 0.0
      %vm922 = vcmp.ge.f32.partialorder %v901, 0.0
      %vm923 = vcmp.ge.f32.partialorder %v904, 0.0
      %v924 = vstv %s907
      %v925 = vmul.f32 %v924, %v845
      %v926 = vmul.f32 %v924, %v848
      %v927 = vmul.f32 %v924, %v853
      %v928 = vmul.f32 %v924, %v856
      %v929 = vmul.f32 %v924, %v861
      %v930 = vmul.f32 %v924, %v864
      %v931 = vmul.f32 %v924, %v869
      %v932 = vmul.f32 %v924, %v872
      %v933 = vmul.f32 %v924, %v877
      %v934 = vmul.f32 %v924, %v880
      %v935 = vmul.f32 %v924, %v885
      %v936 = vmul.f32 %v924, %v888
      %v937 = vmul.f32 %v924, %v893
      %v938 = vmul.f32 %v924, %v896
      %v939 = vmul.f32 %v924, %v901
      %v940 = vmul.f32 %v924, %v904
      %v941 = vsel %vm908, %v845, %v925
      %v942 = vsel %vm909, %v848, %v926
      %v943 = vsel %vm910, %v853, %v927
      %v944 = vsel %vm911, %v856, %v928
      %v945 = vsel %vm912, %v861, %v929
      %v946 = vsel %vm913, %v864, %v930
      %v947 = vsel %vm914, %v869, %v931
      %v948 = vsel %vm915, %v872, %v932
      %v949 = vsel %vm916, %v877, %v933
      %v950 = vsel %vm917, %v880, %v934
      %v951 = vsel %vm918, %v885, %v935
      %v952 = vsel %vm919, %v888, %v936
      %v953 = vsel %vm920, %v893, %v937
      %v954 = vsel %vm921, %v896, %v938
      %v955 = vsel %vm922, %v901, %v939
      %v956 = vsel %vm923, %v904, %v940
      %957 = vst.msk [vmem:[%s234] sm:$0xff] %vm745, %v941
      %958 = vst.msk [vmem:[%s234 + $0x8] sm:$0xff] %vm745, %v942
      %959 = vst.msk [vmem:[%s234 + $0x10] sm:$0xff] %vm745, %v943
      %960 = vst.msk [vmem:[%s234 + $0x18] sm:$0xff] %vm745, %v944
      %961 = vst.msk [vmem:[%s234 + $0x20] sm:$0xff] %vm745, %v945
      %962 = vst.msk [vmem:[%s234 + $0x28] sm:$0xff] %vm745, %v946
      %963 = vst.msk [vmem:[%s234 + $0x30] sm:$0xff] %vm745, %v947
      %964 = vst.msk [vmem:[%s234 + $0x38] sm:$0xff] %vm745, %v948
      %965 = vst.msk [vmem:[%s234 + $0x40] sm:$0xff] %vm745, %v949
      %966 = vst.msk [vmem:[%s234 + $0x48] sm:$0xff] %vm745, %v950
      %967 = vst.msk [vmem:[%s234 + $0x50] sm:$0xff] %vm745, %v951
      %968 = vst.msk [vmem:[%s234 + $0x58] sm:$0xff] %vm745, %v952
      %969 = vst.msk [vmem:[%s234 + $0x60] sm:$0xff] %vm745, %v953
      %970 = vst.msk [vmem:[%s234 + $0x68] sm:$0xff] %vm745, %v954
      %971 = vst.msk [vmem:[%s234 + $0x70] sm:$0xff] %vm745, %v955
      %972 = vst.msk [vmem:[%s234 + $0x78] sm:$0xff] %vm745, %v956
      %p973 = scmp.lt.s32.totalorder %s20, 1
      %s974 = scalar_select %p973, %s20, 1
      %p975 = scmp.lt.s32.totalorder %s21, 1
      %s976 = scalar_select %p975, %s21, 1
      %s977 = smul.addr %s976, 16
      %s978 = smul.addr %s974, 32
      %s979 = sadd.s32 %s977, %s978
      %s980 = smul.addr %s979, 8
      %s981 = scalar_lea.vmem %s4, %s980
      // Predicated region
      $region37: #{deconv_block_forward.1} parent=35 // pred_check
        %p982 = pneg %p139
      $region38: #{deconv_block_forward.1} parent=35 // pred_check_branch
        %984 = sbr.rel (%p982) target = $region40
      $region39: #{deconv_block_forward.1} parent=35 // pred_region
        _
      $region40: #{deconv_block_forward.1} parent=35 // pred_fallthru
        _
    $region36: #{deconv_block_forward.1} parent=5 // pred_fallthru
      _
    %p985 = scmp.le.s32.totalorder 2, %s11
    // Predicated region
    $region41: #{deconv_block_forward.1} parent=5 // pred_check
      %p986 = pneg %p985
    $region42: #{deconv_block_forward.1} parent=5 // pred_check_branch
      %988 = sbr.rel (%p986) target = $region44
    $region43: #{deconv_block_forward.1} parent=5 // pred_region
      %s989 = ssub.s32 %s11, 2
      // Predicated region
      $region45: #{deconv_block_forward.1} parent=43 // pred_check
        %p990 = pneg %p145
      $region46: #{deconv_block_forward.1} parent=43 // pred_check_branch
        %992 = sbr.rel (%p990) target = $region48
      $region47: #{deconv_block_forward.1} parent=43 // pred_region
        %p993 = scmp.lt.s32.totalorder %s22, 1
        %s994 = scalar_select %p993, %s22, 1
        %p995 = scmp.lt.s32.totalorder %s23, 1
        %s996 = scalar_select %p995, %s23, 1
        %s997 = smul.addr %s996, 16
        %s998 = smul.addr %s994, 32
        %s999 = sadd.s32 %s997, %s998
        %s1000 = smul.addr %s999, 8
        %s1001 = scalar_lea.vmem %s4, %s1000
      $region48: #{deconv_block_forward.1} parent=43 // pred_fallthru
        _
    $region44: #{deconv_block_forward.1} parent=5 // pred_fallthru
      _
  $region6: #{deconv_block_forward.1} parent=0 // loop_footer
    %s15 = sadd.s32 1, %s11
  $region7: #{deconv_block_forward.1} parent=0 // loop_footer_branch
    %10 = sbr.rel target = $region3
  $region8: #{deconv_block_forward.1} parent=0 // loop_exit
    _

</llo_original>
